<compile_context>
chip_gen: v7x
topology: tpu7x:2x2x1
jax: 0.10.0
libtpu: 0.0.40
codegen_flags: <defaults>
</compile_context>

<pallas_src>
import functools

import jax
import jax.numpy as jnp
import numpy as np
from jax.experimental import pallas as pl
from jax.experimental.pallas import tpu as pltpu


def _mb_std_stats_kernel(x_ref, o_ref, *, G, M):
    """x_ref: (N, tc, Lf) folded-channel chunk.  o_ref: (1, M, 1) partial std sum."""
    inv_g = 1.0 / G

    # Pass 1: per-element mean over the G group samples of each subgroup m.
    # Sample n = g*M + m, so group slab g is rows [g*M, (g+1)*M).  G is a small static
    # int, so a static Python loop keeps every ref slice static.
    acc = x_ref[pl.ds(0, M)].astype(jnp.float32)              # (M, tc, Lf)
    for g in range(1, G):
        acc = acc + x_ref[pl.ds(g * M, M)].astype(jnp.float32)
    mu = acc * inv_g

    # Pass 2: per-element variance (two-pass -> same numerics as the reference;
    # no E[x^2]-E[x]^2 rewrite).
    d = x_ref[pl.ds(0, M)].astype(jnp.float32) - mu
    vacc = d * d
    for g in range(1, G):
        d = x_ref[pl.ds(g * M, M)].astype(jnp.float32) - mu
        vacc = vacc + d * d
    std = jnp.sqrt(vacc * inv_g + 1e-8)                        # (M, tc, Lf) f32

    # Lane reduce (XLU), then chunk-channel reduce; single dense store per step.
    s_ch = jnp.sum(std, axis=-1)                               # (M, tc)
    o_ref[...] = jnp.sum(s_ch, axis=-1, keepdims=True)[None]   # (1, M, 1)


def _choose_fold(c, HW, sub):
    """Fold L channels into the lane dim: L | c, prefer L*HW a multiple of 128."""
    if HW % 128 == 0:
        return 1
    cands = [L for L in range(1, c + 1) if c % L == 0 and (L * HW) % 128 == 0]
    # Prefer folds that keep the per-feature folded channel count sublane-divisible.
    good = [L for L in cands if (c // L) % sub == 0 or (c // L) == 1]
    if good:
        return min(good)
    if cands:
        return min(cands)
    # No lane-dense fold exists; partially fill lanes as a best-effort fallback.
    for L in range(c, 0, -1):
        if c % L == 0 and L * HW <= 512:
            return L
    return 1


def _vmem_budget():
    """(vmem_limit_bytes, chunk_sizing_budget) derived from the actual part."""
    cap = 64 * 1024 * 1024                    # v7x per-TC VMEM; safe default everywhere
    try:
        cap = int(getattr(pltpu.get_tpu_info(), "vmem_capacity_bytes", cap))
    except Exception:
        pass
    if cap <= 64 * 1024 * 1024:               # v7x-class parts: leave ample headroom
        vmem_limit = 40 * 1024 * 1024
    else:                                     # v5e/v6e (128 MiB): stream big chunks
        vmem_limit = min(cap - 32 * 1024 * 1024, 96 * 1024 * 1024)
    return vmem_limit, vmem_limit - 8 * 1024 * 1024


def _choose_chunk(N, Cf, cf, Lf, itemsize, M, budget, sub):
    """Largest sublane-aligned folded-channel chunk tc with tc | cf that fits budget.

    Returns None when no layout-legal, VMEM-fitting chunk exists (caller falls back
    to the pure-JAX path instead of overshooting VMEM).
    """
    def est(tc):
        # double-buffered input block + ~7 live f32 (M, tc, Lf) temporaries
        # (acc, mu, d, vacc, std, cast temps) + margin for output/internal scratch.
        return 2 * N * tc * Lf * itemsize + 7 * M * tc * Lf * 4 + (1 << 20)

    cands = [t for t in range(sub, cf + 1, sub) if cf % t == 0]
    if not cands and Cf == cf:
        # F == 1: a full-extent chunk (tc == Cf) is exempt from the sublane rule.
        cands = [cf]
    if not cands:
        return None
    fitting = [t for t in cands if est(t) <= budget]
    if not fitting:
        return None
    # Prefer >= 2 grid steps so v7x's second TensorCore gets a share of the work.
    multi = [t for t in fitting if Cf // t >= 2]
    return max(multi) if multi else max(fitting)


def _minibatch_std_jax(x, G, F):
    """Pure-JAX path: small-size bypass and robustness fallback."""
    N, C, H, W = x.shape
    c = C // F
    y = x.reshape(G, -1, F, c, H, W).astype(jnp.float32)
    y = y - y.mean(axis=0)
    y = jnp.mean(jnp.square(y), axis=0)
    y = jnp.sqrt(y + 1e-8)
    y = y.mean(axis=(2, 3, 4))                 # (M, F)
    y = jnp.tile(y.reshape(-1, F, 1, 1), (G, 1, H, W)).astype(x.dtype)
    return jnp.concatenate([x, y], axis=1)


def minibatch_std(x, group_size, num_channels=1, *, use_kernel=None):
    N, C, H, W = x.shape
    G = int(min(group_size, N)) if group_size is not None else N
    F = int(num_channels)
    assert N % G == 0 and C % F == 0
    M = N // G
    c = C // F
    HW = H * W
    itemsize = x.dtype.itemsize

    if use_kernel is None:
        # Small-size bypass: kernel launch/grid overhead dominates below ~128 KiB.
        use_kernel = N * C * HW * itemsize >= 128 * 1024
    if not use_kernel:
        return _minibatch_std_jax(x, G, F)

    sub = max(8, 256 // (itemsize * 8))        # sublane tile: 8 (f32) / 16 (bf16)

    L = _choose_fold(c, HW, sub)               # fold L channels into the lane dim
    Lf = L * HW
    Cf = C // L
    cf = c // L

    vmem_limit, budget = _vmem_budget()
    tc = _choose_chunk(N, Cf, cf, Lf, itemsize, M, budget, sub)
    if tc is None:
        # No legal/fitting chunk (odd feature split or huge N*HW); let XLA handle it.
        return _minibatch_std_jax(x, G, F)

    K = Cf // tc
    x_f = x.reshape(N, Cf, Lf)                 # lane-dense folded layout (free reshape)

    kernel = functools.partial(_mb_std_stats_kernel, G=G, M=M)
    partials = pl.pallas_call(
        kernel,
        out_shape=jax.ShapeDtypeStruct((K, M, 1), jnp.float32),
        grid_spec=pltpu.PrefetchScalarGridSpec(
            num_scalar_prefetch=0,
            grid=(K,),
            in_specs=[pl.BlockSpec((N, tc, Lf), lambda k: (0, k, 0))],
            out_specs=pl.BlockSpec((1, M, 1), lambda k: (k, 0, 0)),
        ),
        compiler_params=pltpu.CompilerParams(
            dimension_semantics=("parallel",),   # independent chunks (v7x megacore)
            vmem_limit_bytes=vmem_limit,
        ),
    )(x_f)

    # A chunk never straddles a feature boundary (tc | cf), so chunk k belongs to
    # feature k // (cf // tc); regroup and average on the host (tiny arrays).
    KpF = cf // tc
    feat = partials[:, :, 0].reshape(F, KpF, M).sum(axis=1).T * (1.0 / (c * HW))  # (M, F)

    # Broadcast back: sample n = g*M + m uses feat[m] (PyTorch repeat(G, 1, H, W)).
    y = jnp.broadcast_to(feat.reshape(1, M, F, 1, 1), (G, M, F, H, W))
    y = y.reshape(N, F, H, W).astype(x.dtype)
    # The identity copy of the C input channels is a pure memcpy; leave it to XLA's
    # concatenate instead of serializing it through the kernel.
    return jnp.concatenate([x, y], axis=1)


def minibatch_std_ref(x, group_size, num_channels=1):
    """Pure-JAX reference mirroring the PyTorch forward."""
    N, C, H, W = x.shape
    G = int(min(group_size, N)) if group_size is not None else N
    F = int(num_channels)
    c = C // F
    y = x.reshape(G, -1, F, c, H, W).astype(jnp.float32)
    y = y - y.mean(axis=0)
    y = jnp.mean(jnp.square(y), axis=0)
    y = jnp.sqrt(y + 1e-8)
    y = y.mean(axis=(2, 3, 4))                 # (M, F)
    y = y.reshape(-1, F, 1, 1)
    y = jnp.tile(y, (G, 1, H, W)).astype(x.dtype)
    return jnp.concatenate([x, y], axis=1)


if __name__ == "__main__":
    key = jax.random.PRNGKey(0)
    k1, k2, k3 = jax.random.split(key, 3)

    # Config 1: tiny final-block shape. Default path is the small-size bypass; we also
    # force the kernel (K=1, tc==Cf full-extent path) to check it at small shapes.
    x1 = jax.random.normal(k1, (4, 4, 16, 16), dtype=jnp.float32)
    ref1 = jax.block_until_ready(minibatch_std_ref(x1, group_size=2, num_channels=1))
    out1 = jax.block_until_ready(minibatch_std(x1, group_size=2, num_channels=1))
    out1k = jax.block_until_ready(
        minibatch_std(x1, group_size=2, num_channels=1, use_kernel=True))
    assert out1.shape == (4, 5, 16, 16), out1.shape
    np.testing.assert_allclose(np.asarray(out1), np.asarray(ref1), rtol=1e-5, atol=1e-5)
    np.testing.assert_allclose(np.asarray(out1k), np.asarray(ref1), rtol=1e-5, atol=1e-5)

    # Config 2: exercises lane folding (HW=64 -> L=2, Lf=128), F>1 feature mapping,
    # and the multi-chunk grid (K=4).
    x2 = jax.random.normal(k2, (8, 256, 8, 8), dtype=jnp.float32)
    out2 = jax.block_until_ready(minibatch_std(x2, group_size=4, num_channels=4))
    ref2 = jax.block_until_ready(minibatch_std_ref(x2, group_size=4, num_channels=4))
    assert out2.shape == (8, 260, 8, 8), out2.shape
    np.testing.assert_allclose(np.asarray(out2), np.asarray(ref2), rtol=1e-5, atol=1e-5)

    # Config 3: no folding needed (HW=256), F=1, M=1, K>=2 preference path.
    x3 = jax.random.normal(k3, (4, 64, 16, 16), dtype=jnp.float32)
    out3 = jax.block_until_ready(minibatch_std(x3, group_size=4, num_channels=1))
    ref3 = jax.block_until_ready(minibatch_std_ref(x3, group_size=4, num_channels=1))
    assert out3.shape == (4, 65, 16, 16), out3.shape
    np.testing.assert_allclose(np.asarray(out3), np.asarray(ref3), rtol=1e-5, atol=1e-5)

    print("KERNEL_OK")
</pallas_src>

<mosaic_0001>
module attributes {stable_mosaic.version = 11 : i64} {
  func.func @_mb_std_stats_kernel(%arg0: i32, %arg1: memref<4x4x256xf32, #tpu.memory_space<vmem>>, %arg2: memref<1x2x1xf32, #tpu.memory_space<vmem>>) attributes {dimension_semantics = [#tpu.dimension_semantics<parallel>], iteration_bounds = array<i64: 1>, scalar_prefetch = 0 : i64, scratch_operands = 0 : i64, tpu.core_type = #tpu.core_type<tc>, window_params = [{transform_indices = @transform_0, window_bounds = array<i64: 4, 4, 256>}, {transform_indices = @transform_1, window_bounds = array<i64: 1, 2, 1>}]} {
    %c0 = arith.constant 0 : index
    %c0_0 = arith.constant 0 : index
    %c0_1 = arith.constant 0 : index
    %0 = vector.load %arg1[%c0, %c0_0, %c0_1] : memref<4x4x256xf32, #tpu.memory_space<vmem>>, vector<2x4x256xf32>
    %c2 = arith.constant 2 : index
    %c0_2 = arith.constant 0 : index
    %c0_3 = arith.constant 0 : index
    %1 = vector.load %arg1[%c2, %c0_2, %c0_3] : memref<4x4x256xf32, #tpu.memory_space<vmem>>, vector<2x4x256xf32>
    %2 = arith.addf %0, %1 : vector<2x4x256xf32>
    %cst = arith.constant 5.000000e-01 : f32
    %3 = vector.broadcast %cst : f32 to vector<2x4x256xf32>
    %4 = arith.mulf %2, %3 : vector<2x4x256xf32>
    %c0_4 = arith.constant 0 : index
    %c0_5 = arith.constant 0 : index
    %c0_6 = arith.constant 0 : index
    %5 = vector.load %arg1[%c0_4, %c0_5, %c0_6] : memref<4x4x256xf32, #tpu.memory_space<vmem>>, vector<2x4x256xf32>
    %6 = arith.subf %5, %4 : vector<2x4x256xf32>
    %7 = arith.mulf %6, %6 : vector<2x4x256xf32>
    %c2_7 = arith.constant 2 : index
    %c0_8 = arith.constant 0 : index
    %c0_9 = arith.constant 0 : index
    %8 = vector.load %arg1[%c2_7, %c0_8, %c0_9] : memref<4x4x256xf32, #tpu.memory_space<vmem>>, vector<2x4x256xf32>
    %9 = arith.subf %8, %4 : vector<2x4x256xf32>
    %10 = arith.mulf %9, %9 : vector<2x4x256xf32>
    %11 = arith.addf %7, %10 : vector<2x4x256xf32>
    %cst_10 = arith.constant 5.000000e-01 : f32
    %12 = vector.broadcast %cst_10 : f32 to vector<2x4x256xf32>
    %13 = arith.mulf %11, %12 : vector<2x4x256xf32>
    %cst_11 = arith.constant 9.99999993E-9 : f32
    %14 = vector.broadcast %cst_11 : f32 to vector<2x4x256xf32>
    %15 = arith.addf %13, %14 : vector<2x4x256xf32>
    %16 = math.sqrt %15 : vector<2x4x256xf32>
    %cst_12 = arith.constant dense<0.000000e+00> : vector<2x4xf32>
    %17 = vector.multi_reduction <add>, %16, %cst_12 [2] : vector<2x4x256xf32> to vector<2x4xf32>
    %cst_13 = arith.constant dense<0.000000e+00> : vector<2xf32>
    %18 = vector.multi_reduction <add>, %17, %cst_13 [1] : vector<2x4xf32> to vector<2xf32>
    %19 = vector.shape_cast %18 : vector<2xf32> to vector<2x1xf32>
    %20 = vector.shape_cast %19 : vector<2x1xf32> to vector<1x2x1xf32>
    %c0_14 = arith.constant 0 : index
    %c0_15 = arith.constant 0 : index
    %c0_16 = arith.constant 0 : index
    %21 = vector.load %arg2[%c0_14, %c0_15, %c0_16] : memref<1x2x1xf32, #tpu.memory_space<vmem>>, vector<1x2x1xf32>
    tpu.vector_store %arg2[%c0_14, %c0_15, %c0_16], %20 {strides = array<i32>} : memref<1x2x1xf32, #tpu.memory_space<vmem>>, vector<1x2x1xf32>,
    return
  }
  func.func @transform_0(%arg0: i32) -> (i32, i32, i32) {
    %c0_i32 = arith.constant 0 : i32
    %c0_i32_0 = arith.constant 0 : i32
    %c0_i32_1 = arith.constant 0 : i32
    return %c0_i32, %arg0, %c0_i32_0 : i32, i32, i32
  }
  func.func @transform_1(%arg0: i32) -> (i32, i32, i32) {
    %c0_i32 = arith.constant 0 : i32
    %c0_i32_0 = arith.constant 0 : i32
    %c0_i32_1 = arith.constant 0 : i32
    return %arg0, %c0_i32, %c0_i32_0 : i32, i32, i32
  }
}

</mosaic_0001>

<llo_original>
// kernel: tpu_custom_call.1
$region0: #{tpu_custom_call.1}
  #allocation0 [shape = 'u32[]', space=smem, size = 0x4, offset = 0x4, fixed_abs, tag = 'smem constant byte address 0x4 - core index']
  #allocation1 [shape = 'u32[144,128]{1,0:T(1,128)}', space=vmem, size = 0x12000, scoped, tag = 'internal scratch']
  %s0 = inlined_call_operand.hbm [shape: f32[4,4,256], index: 0, kind: input, shape index: {}]
  %s1 = inlined_call_operand.vmem [shape: f32[1,2,1], index: 1, kind: output, shape index: {}]
  %s2 = sld [smem:[#allocation0]]
  $region18: #{tpu_custom_call.1} parent=0
    _
  %s4 = ssub.s32 1, %s2
  %s5 = scalar_select 0, %s4, %s2
  $region1: #{tpu_custom_call.1} parent=0
    #allocation2 [shape = 'u8[16384]{0}', space=vmem, size = 0x4000, scoped, tag = 'input window, operand 0, single buffered']
    #allocation3 [shape = 's32[1]{0}', space=sflag, size = 0x4, scoped, tag = 'scoped memory for tpu_custom_call.1']
    %6 = vsyncpa [#allocation3], 0
    // Predicated region
    $region2: #{tpu_custom_call.1} parent=1 // pred_check
      _
    $region3: #{tpu_custom_call.1} parent=1 // pred_check_branch
      %8 = sbr.rel (0) target = $region5
    $region4: #{tpu_custom_call.1} parent=1 // pred_region
      %s10 = ssub.s32 512, 512
      %11 = vsyncadd [#allocation3], %s10
      %s12 = sshll.u32 [#allocation2], 4
      %s13 = int_to_ptr.vmem [resolvable:$true] %s12
      %18 = dma.hbm_to_vmem [thread:$0]  %s0, 512, %s13, [#allocation3], 128, 128, 8
    $region5: #{tpu_custom_call.1} parent=1 // pred_fallthru
      _
    // Predicated region
    $region6: #{tpu_custom_call.1} parent=1 // pred_check
      _
    $region7: #{tpu_custom_call.1} parent=1 // pred_check_branch
      %20 = sbr.rel (0) target = $region9
    $region8: #{tpu_custom_call.1} parent=1 // pred_region
      %21 = dma.done [#allocation3], 512
    $region9: #{tpu_custom_call.1} parent=1 // pred_fallthru
      _
    %v22 = vld [vmem:[#allocation2] sm:$0xff]
    %v23 = vld [vmem:[#allocation2 + $0x8] sm:$0xff]
    %s24 = scalar_lea.vmem [#allocation2], 16
    %v25 = vld [vmem:[%s24] sm:$0xff]
    %v26 = vld [vmem:[%s24 + $0x8] sm:$0xff]
    %v27 = vadd.f32 %v22, %v25
    %v28 = vadd.f32 %v23, %v26
    %v29 = vmul.f32 %v27, 0.5
    %v30 = vmul.f32 %v28, 0.5
    %v31 = vsub.f32 %v22, %v29
    %v32 = vsub.f32 %v23, %v30
    %v33 = vmul.f32 %v31, %v31
    %v34 = vmul.f32 %v32, %v32
    %v35 = vsub.f32 %v25, %v29
    %v36 = vsub.f32 %v26, %v30
    %v37 = vmul.f32 %v35, %v35
    %v38 = vmul.f32 %v36, %v36
    %v39 = vadd.f32 %v33, %v37
    %v40 = vadd.f32 %v34, %v38
    %v41 = vmul.f32 %v39, 0.5
    %v42 = vmul.f32 %v40, 0.5
    %v43 = vadd.f32 %v41, 1e-08
    %v44 = vadd.f32 %v42, 1e-08
    %v45 = vrsqrt.pop %v43
    %v46 = vmul.f32 %v43, %v45
    %vm47 = vcmp.eq.f32.partialorder %v43, inf
    %v48 = vsel %vm47, %v43, %v46
    %vm49 = vcmp.eq.f32.partialorder %v43, 0.0
    %v50 = vand.u32 %v43, 2147483648
    %v51 = vsel %vm49, %v50, %v48
    %v52 = vrsqrt.pop %v44
    %v53 = vmul.f32 %v44, %v52
    %vm54 = vcmp.eq.f32.partialorder %v44, inf
    %v55 = vsel %vm54, %v44, %v53
    %vm56 = vcmp.eq.f32.partialorder %v44, 0.0
    %v57 = vand.u32 %v44, 2147483648
    %v58 = vsel %vm56, %v57, %v55
    %v61 = vcombine.high %v51, %v51
    %v62 = vcombine.high %v58, %v58
    %vm65 = vcmask 1043456
    %v66 = vsel %vm65, %v51, 0.0
    %v67 = vsel %vm65, %v61, 0.0
    %v68 = vadd.f32 %v66, %v67
    %69 = vadd.xlane.f32.xlu0 %v68
    %v70 = vpop.xlane.xlu0 %69
    %v71 = vsel %vm65, %v58, 0.0
    %v72 = vsel %vm65, %v62, 0.0
    %v73 = vadd.f32 %v71, %v72
    %74 = vadd.xlane.f32.xlu0 %v73
    %v75 = vpop.xlane.xlu0 %74
    %v78 = vlaneseq
    %v79 = vand.u32 %v78, 127
    %v80 = vlaneseq
    %v81 = vshrl.u32 %v80, 7
    %v82 = vsub.s32 %v79, %v81
    %v83 = vrot.slane %v70, %v82
    %v84 = vlaneseq
    %v85 = vshrl.u32 %v84, 7
    %v86 = vsub.s32 %v79, %v85
    %v87 = vrot.slane %v75, %v86
    %vm88 = vcmask 1041409
    %v89 = vsel %vm88, %v87, %v83
    %vm91 = vcmask 25600
    %v92 = vsel %vm91, %v89, 0.0
    %93 = vadd.xlane.f32.xlu0 %v92
    %v94 = vpop.xlane.xlu0 %93
    %vm95 = vcmask 1024
    %96 = vst.msk [vmem:[%s1] sm:$0x3] %vm95, %v94
    // Predicated region
    $region10: #{tpu_custom_call.1} parent=1 // pred_check
      _
    $region11: #{tpu_custom_call.1} parent=1 // pred_check_branch
      %98 = sbr.rel (0) target = $region13
    $region12: #{tpu_custom_call.1} parent=1 // pred_region
      _
    $region13: #{tpu_custom_call.1} parent=1 // pred_fallthru
      _
    // Predicated region
    $region14: #{tpu_custom_call.1} parent=1 // pred_check
      _
    $region15: #{tpu_custom_call.1} parent=1 // pred_check_branch
      %100 = sbr.rel (0) target = $region17
    $region16: #{tpu_custom_call.1} parent=1 // pred_region
      _
    $region17: #{tpu_custom_call.1} parent=1 // pred_fallthru
      _
    %101 = vsyncpa [#allocation3], 1

</llo_original>
